<compile_context>
chip_gen: v6e
topology: v6e:2x2x1
jax: 0.10.0
libtpu: 0.0.40
codegen_flags: <defaults>
</compile_context>

<pallas_src>
import jax
import jax.numpy as jnp
from jax.experimental import pallas as pl
from jax.experimental.pallas import tpu as pltpu


def _round_up(n: int, m: int) -> int:
    return ((n + m - 1) // m) * m


def mlp_kernel(xt_ref, w1_ref, b1_ref, w2_ref, b2_ref, o_ref):
    # xt_ref: (10, TB)   batch along lanes
    # w1_ref: (5, 10)    PyTorch fc1.weight layout (out, in)
    # b1_ref: (5, 1)
    # w2_ref: (5, 1)     fc2.weight transposed
    # b2_ref: (1, 1)
    # o_ref : (1, TB)    lane-dense output slab
    h = jnp.dot(w1_ref[...], xt_ref[...],
                preferred_element_type=jnp.float32)          # (5, TB) on the MXU
    h = jnp.maximum(h + b1_ref[...], 0.0)                    # bias fused into ReLU epilogue
    # fc2 (out_features = 1): VPU multiply + sublane reduce, not an N=1 matmul.
    o = jnp.sum(h * w2_ref[...], axis=0, keepdims=True)      # (1, TB)
    o_ref[...] = (o + b2_ref[...]).astype(o_ref.dtype)


def net_forward(x, w1, b1, w2, b2, *, block_b=512):
    """x: (B, 10); w1: (5, 10); b1: (5, 1); w2: (5, 1); b2: (1, 1) -> (B, 1)."""
    B, f_in = x.shape
    f_hid = w1.shape[0]

    # Lane-dense batch tile: multiple of 128, capped for VMEM headroom (v7x-safe:
    # a (10, 512) f32 tile is ~20 KiB; double-buffered input is trivially small).
    tb = min(block_b, _round_up(max(B, 1), 128))
    b_pad = _round_up(B, tb)

    # Wrapper-side layout plumbing: pad batch, put it on the lane axis.
    xt = jnp.pad(x, ((0, b_pad - B), (0, 0))).T              # (10, b_pad)

    grid = (b_pad // tb,)

    cost = pl.CostEstimate(
        flops=2 * b_pad * f_in * f_hid + 3 * b_pad * f_hid,
        transcendentals=0,
        bytes_accessed=4 * (b_pad * f_in + b_pad
                            + w1.size + b1.size + w2.size + b2.size),
    )

    out = pl.pallas_call(
        mlp_kernel,
        out_shape=jax.ShapeDtypeStruct((1, b_pad), jnp.float32),
        grid=grid,
        in_specs=[
            pl.BlockSpec((f_in, tb), lambda i: (0, i)),      # x: batch-blocked, double-buffered
            pl.BlockSpec(w1.shape, lambda i: (0, 0)),        # weights/biases stay VMEM-resident
            pl.BlockSpec(b1.shape, lambda i: (0, 0)),
            pl.BlockSpec(w2.shape, lambda i: (0, 0)),
            pl.BlockSpec(b2.shape, lambda i: (0, 0)),
        ],
        out_specs=pl.BlockSpec((1, tb), lambda i: (0, i)),   # lane-dense output slab
        compiler_params=pltpu.CompilerParams(
            dimension_semantics=("parallel",)),              # v7x: 2 TCs split the batch
        cost_estimate=cost,
    )(xt, w1, b1, w2, b2)

    return out[0, :B][:, None]                               # back to PyTorch's (B, 1)


if __name__ == "__main__":
    key = jax.random.PRNGKey(0)
    k_x, k_w1, k_b1, k_w2, k_b2 = jax.random.split(key, 5)

    B = 8  # small batch
    x = jax.random.normal(k_x, (B, 10), dtype=jnp.float32)

    # Parameters in PyTorch-native layouts: fc1.weight (5,10), fc2.weight.T (5,1).
    w1 = jax.random.normal(k_w1, (5, 10), dtype=jnp.float32) * 0.1
    b1 = jax.random.normal(k_b1, (5, 1), dtype=jnp.float32) * 0.1
    w2 = jax.random.normal(k_w2, (5, 1), dtype=jnp.float32) * 0.1
    b2 = jax.random.normal(k_b2, (1, 1), dtype=jnp.float32) * 0.1

    out = net_forward(x, w1, b1, w2, b2)
    jax.block_until_ready(out)

    # Reference check in plain JAX (same math as the PyTorch module).
    ref = jnp.maximum(x @ w1.T + b1.T, 0.0) @ w2 + b2
    assert out.shape == (B, 1)
    assert jnp.allclose(out, ref, atol=1e-5, rtol=1e-5)

    print("KERNEL_OK")
</pallas_src>

<mosaic_0001>
module attributes {stable_mosaic.version = 11 : i64} {
  func.func @mlp_kernel(%arg0: i32, %arg1: memref<10x128xf32, #tpu.memory_space<vmem>>, %arg2: memref<5x10xf32, #tpu.memory_space<vmem>>, %arg3: memref<5x1xf32, #tpu.memory_space<vmem>>, %arg4: memref<5x1xf32, #tpu.memory_space<vmem>>, %arg5: memref<1x1xf32, #tpu.memory_space<vmem>>, %arg6: memref<1x128xf32, #tpu.memory_space<vmem>>) attributes {dimension_semantics = [#tpu.dimension_semantics<parallel>], iteration_bounds = array<i64: 1>, scalar_prefetch = 0 : i64, scratch_operands = 0 : i64, tpu.core_type = #tpu.core_type<tc>, window_params = [{transform_indices = @transform_0, window_bounds = array<i64: 10, 128>}, {pipeline_mode = #tpu.pipeline_mode<synchronous>, transform_indices = @transform_1, window_bounds = array<i64: 5, 10>}, {pipeline_mode = #tpu.pipeline_mode<synchronous>, transform_indices = @transform_2, window_bounds = array<i64: 5, 1>}, {pipeline_mode = #tpu.pipeline_mode<synchronous>, transform_indices = @transform_3, window_bounds = array<i64: 5, 1>}, {pipeline_mode = #tpu.pipeline_mode<synchronous>, transform_indices = @transform_4, window_bounds = array<i64: 1, 1>}, {transform_indices = @transform_5, window_bounds = array<i64: 1, 128>}]} {
    %c0 = arith.constant 0 : index
    %c0_0 = arith.constant 0 : index
    %0 = vector.load %arg2[%c0, %c0_0] : memref<5x10xf32, #tpu.memory_space<vmem>>, vector<5x10xf32>
    %c0_1 = arith.constant 0 : index
    %c0_2 = arith.constant 0 : index
    %1 = vector.load %arg1[%c0_1, %c0_2] : memref<10x128xf32, #tpu.memory_space<vmem>>, vector<10x128xf32>
    %cst = arith.constant dense<0.000000e+00> : vector<5x128xf32>
    %2 = tpu.matmul %0, %1, %cst {dimension_numbers = #tpu.dot_dimension_numbers<[1], [0], [0], [1], [0, 0, 1, 1], [], []>} : vector<5x10xf32>, vector<10x128xf32>, vector<5x128xf32> -> vector<5x128xf32>
    %c0_3 = arith.constant 0 : index
    %c0_4 = arith.constant 0 : index
    %3 = vector.load %arg3[%c0_3, %c0_4] : memref<5x1xf32, #tpu.memory_space<vmem>>, vector<5x1xf32>
    %4 = vector.broadcast %3 : vector<5x1xf32> to vector<5x128xf32>
    %5 = arith.addf %2, %4 : vector<5x128xf32>
    %cst_5 = arith.constant 0.000000e+00 : f32
    %6 = vector.broadcast %cst_5 : f32 to vector<5x128xf32>
    %7 = arith.maximumf %5, %6 : vector<5x128xf32>
    %c0_6 = arith.constant 0 : index
    %c0_7 = arith.constant 0 : index
    %8 = vector.load %arg4[%c0_6, %c0_7] : memref<5x1xf32, #tpu.memory_space<vmem>>, vector<5x1xf32>
    %9 = vector.broadcast %8 : vector<5x1xf32> to vector<5x128xf32>
    %10 = arith.mulf %7, %9 : vector<5x128xf32>
    %cst_8 = arith.constant dense<0.000000e+00> : vector<128xf32>
    %11 = vector.multi_reduction <add>, %10, %cst_8 [0] : vector<5x128xf32> to vector<128xf32>
    %12 = vector.shape_cast %11 : vector<128xf32> to vector<1x128xf32>
    %c0_9 = arith.constant 0 : index
    %c0_10 = arith.constant 0 : index
    %13 = vector.load %arg5[%c0_9, %c0_10] : memref<1x1xf32, #tpu.memory_space<vmem>>, vector<1x1xf32>
    %14 = vector.broadcast %13 : vector<1x1xf32> to vector<1x128xf32>
    %15 = arith.addf %12, %14 : vector<1x128xf32>
    %c0_11 = arith.constant 0 : index
    %c0_12 = arith.constant 0 : index
    %16 = vector.load %arg6[%c0_11, %c0_12] : memref<1x128xf32, #tpu.memory_space<vmem>>, vector<1x128xf32>
    tpu.vector_store %arg6[%c0_11, %c0_12], %15 {strides = array<i32>} : memref<1x128xf32, #tpu.memory_space<vmem>>, vector<1x128xf32>,
    return
  }
  func.func @transform_0(%arg0: i32) -> (i32, i32) {
    %c0_i32 = arith.constant 0 : i32
    %c0_i32_0 = arith.constant 0 : i32
    return %c0_i32, %arg0 : i32, i32
  }
  func.func @transform_1(%arg0: i32) -> (i32, i32) {
    %c0_i32 = arith.constant 0 : i32
    %c0_i32_0 = arith.constant 0 : i32
    %c0_i32_1 = arith.constant 0 : i32
    return %c0_i32, %c0_i32_0 : i32, i32
  }
  func.func @transform_2(%arg0: i32) -> (i32, i32) {
    %c0_i32 = arith.constant 0 : i32
    %c0_i32_0 = arith.constant 0 : i32
    %c0_i32_1 = arith.constant 0 : i32
    return %c0_i32, %c0_i32_0 : i32, i32
  }
  func.func @transform_3(%arg0: i32) -> (i32, i32) {
    %c0_i32 = arith.constant 0 : i32
    %c0_i32_0 = arith.constant 0 : i32
    %c0_i32_1 = arith.constant 0 : i32
    return %c0_i32, %c0_i32_0 : i32, i32
  }
  func.func @transform_4(%arg0: i32) -> (i32, i32) {
    %c0_i32 = arith.constant 0 : i32
    %c0_i32_0 = arith.constant 0 : i32
    %c0_i32_1 = arith.constant 0 : i32
    return %c0_i32, %c0_i32_0 : i32, i32
  }
  func.func @transform_5(%arg0: i32) -> (i32, i32) {
    %c0_i32 = arith.constant 0 : i32
    %c0_i32_0 = arith.constant 0 : i32
    return %c0_i32, %arg0 : i32, i32
  }
}

</mosaic_0001>

<llo_original>
// kernel: tpu_custom_call.1
$region0: #{tpu_custom_call.1}
  #allocation0 [shape = 'u32[]', space=smem, size = 0x4, offset = 0x4, fixed_abs, tag = 'smem constant byte address 0x4 - core index']
  #allocation1 [shape = 'u32[144,128]{1,0:T(1,128)}', space=vmem, size = 0x12000, scoped, tag = 'internal scratch']
  #allocation2 [shape = 'f32[1,1]{1,0:T(1,128)S(1)}', space=vmem, size = 0x200, scoped, tag = 'scoped memory for tpu_custom_call.1']
  %s0 = inlined_call_operand.vmem [shape: f32[10,128], index: 0, kind: input, shape index: {}]
  %s1 = inlined_call_operand.hbm [shape: f32[5,10], index: 1, kind: input, shape index: {}]
  %s2 = inlined_call_operand.vmem [shape: f32[5,1], index: 2, kind: input, shape index: {}]
  %s3 = inlined_call_operand.vmem [shape: f32[5,1], index: 3, kind: input, shape index: {}]
  %s4 = inlined_call_operand.<no memory space> [shape: f32[1,1], index: 4, kind: input, shape index: {}]
  %s5 = inlined_call_operand.hbm [shape: f32[1,128], index: 5, kind: output, shape index: {}]
  %s6 = sld [smem:[#allocation0]]
  $region34: #{tpu_custom_call.1} parent=0
    _
  %s8 = ssub.s32 1, %s6
  %s9 = scalar_select 0, %s8, %s6
  %v10 = vstv %s4
  %11 = vst [vmem:[#allocation2] sm:$0x1] %v10
  $region1: #{tpu_custom_call.1} parent=0
    #allocation3 [shape = 'u8[4096]{0}', space=vmem, size = 0x1000, scoped, tag = 'input window, operand 1, single buffered']
    #allocation4 [shape = 's32[1]{0}', space=sflag, size = 0x4, scoped, tag = 'scoped memory for tpu_custom_call.1']
    #allocation5 [shape = 's32[1]{0}', space=sflag, size = 0x4, scoped, tag = 'scoped memory for tpu_custom_call.1']
    #allocation6 [shape = 'u8[512]{0}', space=vmem, size = 0x400, scoped, tag = 'output window, operand 0, single buffered']
    %12 = vsyncpa [#allocation4], 0
    %13 = vsyncpa [#allocation5], 0
    // Predicated region
    $region2: #{tpu_custom_call.1} parent=1 // pred_check
      _
    $region3: #{tpu_custom_call.1} parent=1 // pred_check_branch
      %15 = sbr.rel (0) target = $region5
    $region4: #{tpu_custom_call.1} parent=1 // pred_region
      _
    $region5: #{tpu_custom_call.1} parent=1 // pred_fallthru
      _
    // Predicated region
    $region6: #{tpu_custom_call.1} parent=1 // pred_check
      _
    $region7: #{tpu_custom_call.1} parent=1 // pred_check_branch
      %17 = sbr.rel (0) target = $region9
    $region8: #{tpu_custom_call.1} parent=1 // pred_region
      %s19 = ssub.s32 128, 128
      %20 = vsyncadd [#allocation4], %s19
      %s22 = sshll.u32 [#allocation3], 4
      %s23 = int_to_ptr.vmem [resolvable:$true] %s22
      %25 = dma.hbm_to_vmem [thread:$0]  %s1, 128, %s23, [#allocation4]
    $region9: #{tpu_custom_call.1} parent=1 // pred_fallthru
      _
    // Predicated region
    $region10: #{tpu_custom_call.1} parent=1 // pred_check
      _
    $region11: #{tpu_custom_call.1} parent=1 // pred_check_branch
      %27 = sbr.rel (0) target = $region13
    $region12: #{tpu_custom_call.1} parent=1 // pred_region
      _
    $region13: #{tpu_custom_call.1} parent=1 // pred_fallthru
      _
    // Predicated region
    $region14: #{tpu_custom_call.1} parent=1 // pred_check
      _
    $region15: #{tpu_custom_call.1} parent=1 // pred_check_branch
      %29 = sbr.rel (0) target = $region17
    $region16: #{tpu_custom_call.1} parent=1 // pred_region
      _
    $region17: #{tpu_custom_call.1} parent=1 // pred_fallthru
      _
    // Predicated region
    $region18: #{tpu_custom_call.1} parent=1 // pred_check
      _
    $region19: #{tpu_custom_call.1} parent=1 // pred_check_branch
      %31 = sbr.rel (0) target = $region21
    $region20: #{tpu_custom_call.1} parent=1 // pred_region
      _
    $region21: #{tpu_custom_call.1} parent=1 // pred_fallthru
      _
    // Predicated region
    $region22: #{tpu_custom_call.1} parent=1 // pred_check
      _
    $region23: #{tpu_custom_call.1} parent=1 // pred_check_branch
      %33 = sbr.rel (0) target = $region25
    $region24: #{tpu_custom_call.1} parent=1 // pred_region
      %34 = dma.done [#allocation4], 128
    $region25: #{tpu_custom_call.1} parent=1 // pred_fallthru
      _
    %v35 = vld [vmem:[#allocation3] sm:$0x1f]
    %v36 = vld [vmem:[%s0] sm:$0xff]
    %v37 = vld [vmem:[%s0 + $0x8] sm:$0x3]
    %v38 = vld [vmem:[%s2] sm:$0x1f]
    %40 = vset.pattern.permute.xlu0 0
    %41 = vperm.xlu0 %40, %v38
    %v42 = vpop.permute.xlu0 %41
    %vm44 = vcmask 80896
    %v46 = vsel %vm44, %v35, 0
    %vm48 = vcmask 1041408
    %v50 = vsel %vm48, %v37, 0
    %52 = vmatprep.subr.mxu0 0.0
    %53 = vmatpush1.msra.mxu0 0.0
    %54 = vmatprep.subr.mxu0 0.0
    %55 = vmatpush1.msra.mxu0 0.0
    %56 = vmatprep.subr.mxu0 0.0
    %57 = vmatpush1.msra.mxu0 0.0
    %58 = vmatprep.subr.mxu0 0.0
    %59 = vmatpush1.msra.mxu0 0.0
    %60 = vmatprep.subr.mxu0 0.0
    %61 = vmatpush1.msra.mxu0 0.0
    %62 = vmatprep.subr.mxu0 0.0
    %63 = vmatpush1.msra.mxu0 0.0
    %64 = vmatprep.subr.mxu0 0.0
    %65 = vmatpush1.msra.mxu0 0.0
    %66 = vmatprep.subr.mxu0 0.0
    %67 = vmatpush1.msra.mxu0 0.0
    %68 = vmatprep.subr.mxu0 0.0
    %69 = vmatpush1.msra.mxu0 0.0
    %70 = vmatprep.subr.mxu0 0.0
    %71 = vmatpush1.msra.mxu0 0.0
    %72 = vmatprep.subr.mxu0 0.0
    %73 = vmatpush1.msra.mxu0 0.0
    %74 = vmatprep.subr.mxu0 0.0
    %75 = vmatpush1.msra.mxu0 0.0
    %76 = vmatprep.subr.mxu0 0.0
    %77 = vmatpush1.msra.mxu0 0.0
    %78 = vmatprep.subr.mxu0 0.0
    %79 = vmatpush1.msra.mxu0 0.0
    %80 = vmatprep.subr.mxu0 0.0
    %81 = vmatpush1.msra.mxu0 %v50
    %82 = vmatprep.subr.mxu0 0.0
    %83 = vmatpush1.msra.mxu0 %v36
    %84 = vmatprep.subr.mxu0 0.0
    %85 = vmatpush2.msra.mxu0 0.0
    %86 = vmatprep.subr.mxu0 0.0
    %87 = vmatpush2.msra.mxu0 0.0
    %88 = vmatprep.subr.mxu0 0.0
    %89 = vmatpush2.msra.mxu0 0.0
    %90 = vmatprep.subr.mxu0 0.0
    %91 = vmatpush2.msra.mxu0 0.0
    %92 = vmatprep.subr.mxu0 0.0
    %93 = vmatpush2.msra.mxu0 0.0
    %94 = vmatprep.subr.mxu0 0.0
    %95 = vmatpush2.msra.mxu0 0.0
    %96 = vmatprep.subr.mxu0 0.0
    %97 = vmatpush2.msra.mxu0 0.0
    %98 = vmatprep.subr.mxu0 0.0
    %99 = vmatpush2.msra.mxu0 0.0
    %100 = vmatprep.subr.mxu0 0.0
    %101 = vmatpush2.msra.mxu0 0.0
    %102 = vmatprep.subr.mxu0 0.0
    %103 = vmatpush2.msra.mxu0 0.0
    %104 = vmatprep.subr.mxu0 0.0
    %105 = vmatpush2.msra.mxu0 0.0
    %106 = vmatprep.subr.mxu0 0.0
    %107 = vmatpush2.msra.mxu0 0.0
    %108 = vmatprep.subr.mxu0 0.0
    %109 = vmatpush2.msra.mxu0 0.0
    %110 = vmatprep.subr.mxu0 0.0
    %111 = vmatpush2.msra.mxu0 0.0
    %112 = vmatprep.subr.mxu0 0.0
    %113 = vmatpush2.msra.mxu0 0.0
    %114 = vmatprep.subr.mxu0 0.0
    %115 = vmatpush2.msra.mxu0 0.0
    %116 = vmatprep.mubr.f32.mxu0 0.0
    %117 = vmatmul.mubr.f32.gmra.mxu0 %v46
    %v118 = vpop.f32.mrf.mxu0
    %v119 = vadd.f32 %v42, %v118
    %v120 = vpop.f32.mrf.mxu0
    %121 = vdwg.mxu0
    %v122 = vmax.f32 %v119, 0.0
    %v123 = vld [vmem:[%s3] sm:$0x1f]
    %125 = vset.pattern.permute.xlu0 0
    %126 = vperm.xlu0 %125, %v123
    %v127 = vpop.permute.xlu0 %126
    %v129 = vmul.f32 %v122, %v127
    %vm130 = vcmask 1044480
    %v131 = vsel %vm130, %v129, 0.0
    %v132 = vrot.slane %v131, 4
    %v133 = vadd.f32 %v131, %v132
    %v134 = vrot.slane %v133, 2
    %v135 = vadd.f32 %v133, %v134
    %v136 = vrot.slane %v135, 1
    %v137 = vadd.f32 %v135, %v136
    %v138 = vld [vmem:[#allocation2] sm:$0x1]
    %140 = vset.pattern.permute.xlu0 0
    %141 = vperm.xlu0 %140, %v138
    %v142 = vpop.permute.xlu0 %141
    %v144 = vlaneseq
    %v145 = vshrl.u32 %v144, 7
    %v146 = vsub.s32 0, %v145
    %v147 = vrot.slane %v142, %v146
    %v148 = vadd.f32 %v137, %v147
    %149 = vst [vmem:[#allocation6] sm:$0x1] %v148
    // Predicated region
    $region26: #{tpu_custom_call.1} parent=1 // pred_check
      _
    $region27: #{tpu_custom_call.1} parent=1 // pred_check_branch
      %151 = sbr.rel (0) target = $region29
    $region28: #{tpu_custom_call.1} parent=1 // pred_region
      %s153 = ssub.s32 16, 16
      %154 = vsyncadd [#allocation5], %s153
      %s156 = sshll.u32 [#allocation6], 4
      %s157 = int_to_ptr.vmem [resolvable:$true] %s156
      %159 = dma.vmem_to_hbm [thread:$0]  %s157, 16, %s5, [#allocation5]
    $region29: #{tpu_custom_call.1} parent=1 // pred_fallthru
      _
    // Predicated region
    $region30: #{tpu_custom_call.1} parent=1 // pred_check
      _
    $region31: #{tpu_custom_call.1} parent=1 // pred_check_branch
      %161 = sbr.rel (0) target = $region33
    $region32: #{tpu_custom_call.1} parent=1 // pred_region
      %162 = dma.done [#allocation5], 16
    $region33: #{tpu_custom_call.1} parent=1 // pred_fallthru
      _
    %163 = vsyncpa [#allocation4], 1
    %164 = vsyncpa [#allocation5], 1

</llo_original>
